<compile_context>
chip_gen: v7x
topology: tpu7x:2x2x1
jax: 0.10.0
libtpu: 0.0.40
codegen_flags: <defaults>
</compile_context>

<pallas_src>
import jax
import jax.numpy as jnp
from jax import lax
from jax.experimental import pallas as pl
from jax.experimental.pallas import tpu as pltpu


def _tensor_kernel(h_ref, s_ref, o_ref):
    # h_ref: (view*B, D)   -- all views' hidden states stacked along rows.
    # s_ref: (view, B, B)  -- per-view mixing matrices.
    # o_ref: (view, D, B)  -- o_ref[v] = h[v].T @ s[v]  (PyTorch convention).
    view, B, _ = s_ref.shape

    h_flat = h_ref[...]                                   # (view*B, D)
    zero = jnp.zeros((B, B), dtype=h_flat.dtype)

    # Block-diagonal S so both views go through a single MXU pass
    # (one vmatmul push + one result drain instead of `view`).
    row_blocks = []
    for v in range(view):                                 # view is tiny & static
        blocks = [s_ref[v] if u == v else zero for u in range(view)]
        row_blocks.append(jnp.concatenate(blocks, axis=1))  # (B, view*B)
    s_bd = jnp.concatenate(row_blocks, axis=0)              # (view*B, view*B)

    # Contract over axis 0 of both operands: result = h_flat.T @ s_bd,
    # shape (D, view*B); column block v equals h[v].T @ s[v].
    out_flat = lax.dot_general(
        h_flat, s_bd,
        dimension_numbers=(((0,), (0,)), ((), ())),
        preferred_element_type=jnp.float32,
    ).astype(o_ref.dtype)                                  # cast once, not per view

    for v in range(view):                                  # 2 tiny stores, fully static
        o_ref[v] = out_flat[:, v * B:(v + 1) * B]


def tensor_forward(h_stack, s_stack):
    """h_stack: (view, B, D), s_stack: (view, B, B) -> (view, D, B).

    out[v] == h[v].T @ s_stack[v], matching the PyTorch module's per-view
    results (stacked along the leading axis instead of a Python list).
    """
    view, B, D = h_stack.shape
    assert s_stack.shape == (view, B, B)

    flops = 2 * view * B * B * D
    bytes_accessed = 4 * (view * B * D + view * B * B + view * D * B)

    return pl.pallas_call(
        _tensor_kernel,
        out_shape=jax.ShapeDtypeStruct((view, D, B), h_stack.dtype),
        in_specs=[
            pl.BlockSpec(memory_space=pltpu.MemorySpace.VMEM),
            pl.BlockSpec(memory_space=pltpu.MemorySpace.VMEM),
        ],
        out_specs=pl.BlockSpec(memory_space=pltpu.MemorySpace.VMEM),
        cost_estimate=pl.CostEstimate(
            flops=flops, transcendentals=0, bytes_accessed=bytes_accessed),
        # h reshape below is contiguous -> a free bitcast, not a real XLA op.
    )(h_stack.reshape(view * B, D), s_stack)


if __name__ == "__main__":
    # Small shapes consistent with the module: batch_size=8, hidden D=32, view=2.
    batch_size = 8
    hidden = 32
    view = 2

    key = jax.random.PRNGKey(0)
    k_h, k_s = jax.random.split(key)

    # Per-view inputs h[v]: (B, D); stacked -> (view, B, D).
    h_stack = jax.random.normal(k_h, (view, batch_size, hidden), dtype=jnp.float32)
    # The module's nn.Parameter(torch.Tensor(B, B)) is uninitialized memory;
    # we seed it deterministically instead.
    s_stack = jax.random.normal(k_s, (view, batch_size, batch_size), dtype=jnp.float32)

    out = jax.block_until_ready(tensor_forward(h_stack, s_stack))

    # Reference: h[v].T @ S[v] for each view, stacked -> (view, D, B).
    ref = jnp.einsum("vbd,vbk->vdk", h_stack, s_stack)
    assert out.shape == (view, hidden, batch_size)
    assert jnp.allclose(out, ref, atol=1e-5, rtol=1e-5)

    print("KERNEL_OK")
</pallas_src>

<mosaic_0001>
module attributes {stable_mosaic.version = 11 : i64} {
  func.func @_tensor_kernel(%arg0: memref<16x32xf32, #tpu.memory_space<vmem>>, %arg1: memref<2x8x8xf32, #tpu.memory_space<vmem>>, %arg2: memref<2x32x8xf32, #tpu.memory_space<vmem>>) attributes {dimension_semantics = [], scalar_prefetch = 0 : i64, scratch_operands = 0 : i64, tpu.core_type = #tpu.core_type<tc>} {
    %c0 = arith.constant 0 : index
    %c0_0 = arith.constant 0 : index
    %0 = vector.load %arg0[%c0, %c0_0] : memref<16x32xf32, #tpu.memory_space<vmem>>, vector<16x32xf32>
    %cst = arith.constant 0.000000e+00 : f32
    %1 = vector.broadcast %cst : f32 to vector<8x8xf32>
    %c0_1 = arith.constant 0 : index
    %c0_2 = arith.constant 0 : index
    %c0_3 = arith.constant 0 : index
    %2 = vector.load %arg1[%c0_1, %c0_2, %c0_3] : memref<2x8x8xf32, #tpu.memory_space<vmem>>, vector<1x8x8xf32>
    %3 = vector.shape_cast %2 : vector<1x8x8xf32> to vector<8x8xf32>
    %4 = tpu.concatenate %3, %1 in 1 : vector<8x8xf32>, vector<8x8xf32> -> vector<8x16xf32>
    %c1 = arith.constant 1 : index
    %c0_4 = arith.constant 0 : index
    %c0_5 = arith.constant 0 : index
    %5 = vector.load %arg1[%c1, %c0_4, %c0_5] : memref<2x8x8xf32, #tpu.memory_space<vmem>>, vector<1x8x8xf32>
    %6 = vector.shape_cast %5 : vector<1x8x8xf32> to vector<8x8xf32>
    %7 = tpu.concatenate %1, %6 in 1 : vector<8x8xf32>, vector<8x8xf32> -> vector<8x16xf32>
    %8 = tpu.concatenate %4, %7 in 0 : vector<8x16xf32>, vector<8x16xf32> -> vector<16x16xf32>
    %cst_6 = arith.constant dense<0.000000e+00> : vector<32x16xf32>
    %9 = tpu.matmul %0, %8, %cst_6 {dimension_numbers = #tpu.dot_dimension_numbers<[0], [0], [1], [1], [0, 1, 1, 1], [], []>} : vector<16x32xf32>, vector<16x16xf32>, vector<32x16xf32> -> vector<32x16xf32>
    %10 = vector.extract_strided_slice %9 {offsets = [0, 0], sizes = [32, 8], strides = [1, 1]} : vector<32x16xf32> to vector<32x8xf32>
    %c0_7 = arith.constant 0 : index
    %c0_8 = arith.constant 0 : index
    %c0_9 = arith.constant 0 : index
    %11 = vector.load %arg2[%c0_7, %c0_8, %c0_9] : memref<2x32x8xf32, #tpu.memory_space<vmem>>, vector<1x32x8xf32>
    %12 = vector.shape_cast %11 : vector<1x32x8xf32> to vector<32x8xf32>
    %13 = vector.shape_cast %10 : vector<32x8xf32> to vector<1x32x8xf32>
    tpu.vector_store %arg2[%c0_7, %c0_8, %c0_9], %13 {strides = array<i32>} : memref<2x32x8xf32, #tpu.memory_space<vmem>>, vector<1x32x8xf32>,
    %14 = vector.extract_strided_slice %9 {offsets = [0, 8], sizes = [32, 8], strides = [1, 1]} : vector<32x16xf32> to vector<32x8xf32>
    %c1_10 = arith.constant 1 : index
    %c0_11 = arith.constant 0 : index
    %c0_12 = arith.constant 0 : index
    %15 = vector.load %arg2[%c1_10, %c0_11, %c0_12] : memref<2x32x8xf32, #tpu.memory_space<vmem>>, vector<1x32x8xf32>
    %16 = vector.shape_cast %15 : vector<1x32x8xf32> to vector<32x8xf32>
    %17 = vector.shape_cast %14 : vector<32x8xf32> to vector<1x32x8xf32>
    tpu.vector_store %arg2[%c1_10, %c0_11, %c0_12], %17 {strides = array<i32>} : memref<2x32x8xf32, #tpu.memory_space<vmem>>, vector<1x32x8xf32>,
    return
  }
}

</mosaic_0001>

<llo_original>
// kernel: tpu_custom_call.1
$region0: #{tpu_custom_call.1}
  #allocation0 [shape = 'u32[]', space=smem, size = 0x4, offset = 0x4, fixed_abs, tag = 'smem constant byte address 0x4 - core index']
  #allocation1 [shape = 'u32[144,128]{1,0:T(1,128)}', space=vmem, size = 0x12000, scoped, tag = 'internal scratch']
  %s0 = inlined_call_operand.hbm [shape: f32[16,32], index: 0, kind: input, shape index: {}]
  %s1 = inlined_call_operand.hbm [shape: f32[2,8,8], index: 1, kind: input, shape index: {}]
  %s2 = inlined_call_operand.vmem [shape: f32[2,32,8], index: 2, kind: output, shape index: {}]
  %s3 = sld [smem:[#allocation0]]
  $region26: #{tpu_custom_call.1} parent=0
    _
  %s5 = ssub.s32 1, %s3
  %s6 = scalar_select 0, %s5, %s3
  $region1: #{tpu_custom_call.1} parent=0
    #allocation2 [shape = 'u8[8192]{0}', space=vmem, size = 0x2000, scoped, tag = 'input window, operand 0, single buffered']
    #allocation3 [shape = 's32[1]{0}', space=sflag, size = 0x4, scoped, tag = 'scoped memory for tpu_custom_call.1']
    #allocation4 [shape = 'u8[8192]{0}', space=vmem, size = 0x2000, scoped, tag = 'input window, operand 1, single buffered']
    #allocation5 [shape = 's32[1]{0}', space=sflag, size = 0x4, scoped, tag = 'scoped memory for tpu_custom_call.1']
    %7 = vsyncpa [#allocation3], 0
    %8 = vsyncpa [#allocation5], 0
    // Predicated region
    $region2: #{tpu_custom_call.1} parent=1 // pred_check
      _
    $region3: #{tpu_custom_call.1} parent=1 // pred_check_branch
      %10 = sbr.rel (0) target = $region5
    $region4: #{tpu_custom_call.1} parent=1 // pred_region
      %s12 = ssub.s32 256, 256
      %13 = vsyncadd [#allocation3], %s12
      %s14 = sshll.u32 [#allocation2], 4
      %s15 = int_to_ptr.vmem [resolvable:$true] %s14
      %20 = dma.hbm_to_vmem [thread:$0]  %s0, 256, %s15, [#allocation3], 128, 128, 8
    $region5: #{tpu_custom_call.1} parent=1 // pred_fallthru
      _
    // Predicated region
    $region6: #{tpu_custom_call.1} parent=1 // pred_check
      _
    $region7: #{tpu_custom_call.1} parent=1 // pred_check_branch
      %22 = sbr.rel (0) target = $region9
    $region8: #{tpu_custom_call.1} parent=1 // pred_region
      %s24 = ssub.s32 256, 256
      %25 = vsyncadd [#allocation5], %s24
      %s26 = sshll.u32 [#allocation4], 4
      %s27 = int_to_ptr.vmem [resolvable:$true] %s26
      %32 = dma.hbm_to_vmem [thread:$0]  %s1, 256, %s27, [#allocation5], 128, 128, 8
    $region9: #{tpu_custom_call.1} parent=1 // pred_fallthru
      _
    // Predicated region
    $region10: #{tpu_custom_call.1} parent=1 // pred_check
      _
    $region11: #{tpu_custom_call.1} parent=1 // pred_check_branch
      %34 = sbr.rel (0) target = $region13
    $region12: #{tpu_custom_call.1} parent=1 // pred_region
      %35 = dma.done [#allocation3], 256
    $region13: #{tpu_custom_call.1} parent=1 // pred_fallthru
      _
    // Predicated region
    $region14: #{tpu_custom_call.1} parent=1 // pred_check
      _
    $region15: #{tpu_custom_call.1} parent=1 // pred_check_branch
      %37 = sbr.rel (0) target = $region17
    $region16: #{tpu_custom_call.1} parent=1 // pred_region
      %38 = dma.done [#allocation5], 256
    $region17: #{tpu_custom_call.1} parent=1 // pred_fallthru
      _
    %v39 = vld [vmem:[#allocation2] sm:$0xff]
    %v40 = vld [vmem:[#allocation2 + $0x8] sm:$0xff]
    %v41 = vld [vmem:[#allocation4] sm:$0xff]
    %vm42 = vcmask 64512
    %v43 = vsel %vm42, %v41, 0.0
    %s44 = scalar_lea.vmem [#allocation4], 8
    %v45 = vld [vmem:[%s44] sm:$0xff]
    %47 = vrot.lane.b32.xlu0 %v45, 8
    %v48 = vpop.permute.xlu0 %47
    %v50 = vsel %vm42, 0.0, %v48
    %51 = vxpose.xlu0.b32.start [1/16] %v39, 128
    %52 = vxpose.xlu0.b32.cont [2/16] %v40, 128
    %53 = vxpose.xlu0.b32.cont [3/16] 0.0, 128
    %54 = vxpose.xlu0.b32.cont [4/16] 0.0, 128
    %55 = vxpose.xlu0.b32.cont [5/16] 0.0, 128
    %56 = vxpose.xlu0.b32.cont [6/16] 0.0, 128
    %57 = vxpose.xlu0.b32.cont [7/16] 0.0, 128
    %58 = vxpose.xlu0.b32.cont [8/16] 0.0, 128
    %59 = vxpose.xlu0.b32.cont [9/16] 0.0, 128
    %60 = vxpose.xlu0.b32.cont [10/16] 0.0, 128
    %61 = vxpose.xlu0.b32.cont [11/16] 0.0, 128
    %62 = vxpose.xlu0.b32.cont [12/16] 0.0, 128
    %63 = vxpose.xlu0.b32.cont [13/16] 0.0, 128
    %64 = vxpose.xlu0.b32.cont [14/16] 0.0, 128
    %65 = vxpose.xlu0.b32.cont [15/16] 0.0, 128
    %66 = vxpose.xlu0.b32.end [16/16] 0.0, 128
    %v67 = vpop.trf.xlu0
    %v68 = vpop.trf.xlu0
    %v69 = vpop.trf.xlu0
    %v70 = vpop.trf.xlu0
    %v71 = vpop.trf.xlu0
    %v72 = vpop.trf.xlu0
    %v73 = vpop.trf.xlu0
    %v74 = vpop.trf.xlu0
    %v75 = vpop.trf.xlu0
    %v76 = vpop.trf.xlu0
    %v77 = vpop.trf.xlu0
    %v78 = vpop.trf.xlu0
    %v79 = vpop.trf.xlu0
    %v80 = vpop.trf.xlu0
    %v81 = vpop.trf.xlu0
    %v82 = vpop.trf.xlu0
    %vm83 = vcmask 130048
    %v85 = vsel %vm83, %v67, 0
    %v88 = vsel %vm83, %v68, 0
    %v91 = vsel %vm83, %v69, 0
    %v94 = vsel %vm83, %v70, 0
    %96 = vmatprep.subr.mxu0 0.0
    %97 = vmatpush1.msra.mxu0 %v43
    %98 = vmatprep.subr.mxu0 0.0
    %99 = vmatpush1.msra.mxu0 %v50
    %100 = vmatprep.subr.mxu0 0.0
    %101 = vmatpush1.msra.mxu0 0.0
    %102 = vmatprep.subr.mxu0 0.0
    %103 = vmatpush1.msra.mxu0 0.0
    %104 = vmatprep.subr.mxu0 0.0
    %105 = vmatpush1.msra.mxu0 0.0
    %106 = vmatprep.subr.mxu0 0.0
    %107 = vmatpush1.msra.mxu0 0.0
    %108 = vmatprep.subr.mxu0 0.0
    %109 = vmatpush1.msra.mxu0 0.0
    %110 = vmatprep.subr.mxu0 0.0
    %111 = vmatpush1.msra.mxu0 0.0
    %112 = vmatprep.subr.mxu0 0.0
    %113 = vmatpush1.msra.mxu0 0.0
    %114 = vmatprep.subr.mxu0 0.0
    %115 = vmatpush1.msra.mxu0 0.0
    %116 = vmatprep.subr.mxu0 0.0
    %117 = vmatpush1.msra.mxu0 0.0
    %118 = vmatprep.subr.mxu0 0.0
    %119 = vmatpush1.msra.mxu0 0.0
    %120 = vmatprep.subr.mxu0 0.0
    %121 = vmatpush1.msra.mxu0 0.0
    %122 = vmatprep.subr.mxu0 0.0
    %123 = vmatpush1.msra.mxu0 0.0
    %124 = vmatprep.subr.mxu0 0.0
    %125 = vmatpush1.msra.mxu0 0.0
    %126 = vmatprep.subr.mxu0 0.0
    %127 = vmatpush1.msra.mxu0 0.0
    %128 = vmatprep.subr.mxu0 0.0
    %129 = vmatpush1.msra.mxu0 0.0
    %130 = vmatprep.subr.mxu0 0.0
    %131 = vmatpush1.msra.mxu0 0.0
    %132 = vmatprep.subr.mxu0 0.0
    %133 = vmatpush1.msra.mxu0 0.0
    %134 = vmatprep.subr.mxu0 0.0
    %135 = vmatpush1.msra.mxu0 0.0
    %136 = vmatprep.subr.mxu0 0.0
    %137 = vmatpush1.msra.mxu0 0.0
    %138 = vmatprep.subr.mxu0 0.0
    %139 = vmatpush1.msra.mxu0 0.0
    %140 = vmatprep.subr.mxu0 0.0
    %141 = vmatpush1.msra.mxu0 0.0
    %142 = vmatprep.subr.mxu0 0.0
    %143 = vmatpush1.msra.mxu0 0.0
    %144 = vmatprep.subr.mxu0 0.0
    %145 = vmatpush1.msra.mxu0 0.0
    %146 = vmatprep.subr.mxu0 0.0
    %147 = vmatpush1.msra.mxu0 0.0
    %148 = vmatprep.subr.mxu0 0.0
    %149 = vmatpush1.msra.mxu0 0.0
    %150 = vmatprep.subr.mxu0 0.0
    %151 = vmatpush1.msra.mxu0 0.0
    %152 = vmatprep.subr.mxu0 0.0
    %153 = vmatpush1.msra.mxu0 0.0
    %154 = vmatprep.subr.mxu0 0.0
    %155 = vmatpush1.msra.mxu0 0.0
    %156 = vmatprep.subr.mxu0 0.0
    %157 = vmatpush1.msra.mxu0 0.0
    %158 = vmatprep.subr.mxu0 0.0
    %159 = vmatpush1.msra.mxu0 0.0
    %160 = vmatprep.mubr.f32.mxu0 0.0
    %161 = vmatmul.mubr.f32.gmra.mrb[0].mxu0 %v85
    %v162 = vpop.f32.mrb[0].mxu0
    %v163 = vadd.f32 0.0, %v162
    %v164 = vpop.f32.mrb[0].mxu0
    %165 = vmatprep.mubr.f32.mxu0 0.0
    %166 = vmatmul.mubr.f32.gmra.mrb[0].mxu0 %v88
    %v167 = vpop.f32.mrb[0].mxu0
    %v168 = vadd.f32 0.0, %v167
    %v169 = vpop.f32.mrb[0].mxu0
    %170 = vmatprep.mubr.f32.mxu0 0.0
    %171 = vmatmul.mubr.f32.gmra.mrb[0].mxu0 %v91
    %v172 = vpop.f32.mrb[0].mxu0
    %v173 = vadd.f32 0.0, %v172
    %v174 = vpop.f32.mrb[0].mxu0
    %175 = vmatprep.mubr.f32.mxu0 0.0
    %176 = vmatmul.mubr.f32.gmra.mrb[0].mxu0 %v94
    %v177 = vpop.f32.mrb[0].mxu0
    %v178 = vadd.f32 0.0, %v177
    %v179 = vpop.f32.mrb[0].mxu0
    %180 = vdwg.mxu0
    %181 = vst.msk [vmem:[%s2] sm:$0xff] %vm42, %v163
    %182 = vst.msk [vmem:[%s2 + $0x8] sm:$0xff] %vm42, %v168
    %183 = vst.msk [vmem:[%s2 + $0x10] sm:$0xff] %vm42, %v173
    %184 = vst.msk [vmem:[%s2 + $0x18] sm:$0xff] %vm42, %v178
    %189 = vrot.lane.b32.xlu0 %v163, 120
    %v190 = vpop.permute.xlu0 %189
    %191 = vrot.lane.b32.xlu0 %v168, 120
    %v192 = vpop.permute.xlu0 %191
    %193 = vrot.lane.b32.xlu0 %v173, 120
    %v194 = vpop.permute.xlu0 %193
    %195 = vrot.lane.b32.xlu0 %v178, 120
    %v196 = vpop.permute.xlu0 %195
    %s201 = scalar_lea.vmem %s2, 32
    %202 = vst.msk [vmem:[%s201] sm:$0xff] %vm42, %v190
    %203 = vst.msk [vmem:[%s201 + $0x8] sm:$0xff] %vm42, %v192
    %204 = vst.msk [vmem:[%s201 + $0x10] sm:$0xff] %vm42, %v194
    %205 = vst.msk [vmem:[%s201 + $0x18] sm:$0xff] %vm42, %v196
    // Predicated region
    $region18: #{tpu_custom_call.1} parent=1 // pred_check
      _
    $region19: #{tpu_custom_call.1} parent=1 // pred_check_branch
      %207 = sbr.rel (0) target = $region21
    $region20: #{tpu_custom_call.1} parent=1 // pred_region
      _
    $region21: #{tpu_custom_call.1} parent=1 // pred_fallthru
      _
    // Predicated region
    $region22: #{tpu_custom_call.1} parent=1 // pred_check
      _
    $region23: #{tpu_custom_call.1} parent=1 // pred_check_branch
      %209 = sbr.rel (0) target = $region25
    $region24: #{tpu_custom_call.1} parent=1 // pred_region
      _
    $region25: #{tpu_custom_call.1} parent=1 // pred_fallthru
      _
    %210 = vsyncpa [#allocation3], 1
    %211 = vsyncpa [#allocation5], 1

</llo_original>
